<compile_context>
chip_gen: v6e
topology: v6e:2x2x1
jax: 0.10.0
libtpu: 0.0.40
codegen_flags: <defaults>
</compile_context>

<pallas_src>
import functools

import jax
import jax.numpy as jnp
from jax.experimental import pallas as pl
from jax.experimental.pallas import tpu as pltpu


def _scale_norm_kernel(x_ref, a_ref, c_ref, o_ref):
    # x_ref/o_ref: (tc, tl) VMEM tile; a_ref/c_ref: (tc, 1) float32 affine coeffs.
    x = x_ref[...].astype(jnp.float32)
    o_ref[...] = (x * a_ref[...] + c_ref[...]).astype(o_ref.dtype)


def _vmem_limit_bytes():
    """Explicit scoped-VMEM budget we hand to Mosaic (well above the 16/32 MiB
    defaults, well below physical capacity: 64 MiB on v5e/v6e, 32 MiB on v7x)."""
    try:
        phys = pltpu.get_tpu_info().vmem_capacity_bytes
    except Exception:
        phys = 128 << 20
    return int(min(64 << 20, phys // 2))


def _choose_tiles(C, L, dtype):
    """Pick (tc, tl): lane-dense, legal for (8,128) tiling, sublane-packed for the
    dtype, sized against the scoped VMEM budget with double-buffering in mind."""
    itemsize = jnp.dtype(dtype).itemsize
    # Sublane packing: 8 rows for 4-byte dtypes, 16 for 2-byte, 32 for 1-byte.
    sub = max(8, 32 // itemsize)
    # x and out are each double-buffered by the pipeline (~4 block-sized buffers
    # plus the tiny coefficient blocks); cap at 4 MiB — streaming roofline is
    # already ~85% there on all three generations.
    target = min(4 << 20, _vmem_limit_bytes() // 5)

    row_bytes = L * itemsize
    if sub * row_bytes <= target:
        # Full rows fit the budget: take tl == L and grow the channel tile.
        tl = L
        max_rows = max(sub, (target // row_bytes) // sub * sub)
        tc = C if C <= max_rows else max_rows          # == C or multiple of sub
    else:
        # Rows are long: one sublane group of channels, lane-dense tile of L.
        tc = C if C <= sub else sub
        lanes = max(128, (target // (tc * itemsize)) // 128 * 128)
        tl = L if L <= lanes else lanes                # == L or multiple of 128

    # v7x megacore: guarantee >= 2 blocks so both TensorCores get work.
    if pl.cdiv(C, tc) * pl.cdiv(L, tl) == 1:
        if L >= 256:
            tl = ((pl.cdiv(L, 2) + 127) // 128) * 128
        elif C > sub:
            tc = ((pl.cdiv(C, 2) + sub - 1) // sub) * sub
    return tc, tl


@functools.partial(jax.jit, static_argnames=("tc", "tl", "vmem_limit"))
def _scale_norm_2d(x2d, a, c, *, tc, tl, vmem_limit):
    C, L = x2d.shape
    itemsize = jnp.dtype(x2d.dtype).itemsize
    grid = (pl.cdiv(C, tc), pl.cdiv(L, tl))
    return pl.pallas_call(
        _scale_norm_kernel,
        out_shape=jax.ShapeDtypeStruct((C, L), x2d.dtype),
        grid=grid,
        in_specs=[
            pl.BlockSpec((tc, tl), lambda i, j: (i, j)),
            pl.BlockSpec((tc, 1), lambda i, j: (i, 0)),
            pl.BlockSpec((tc, 1), lambda i, j: (i, 0)),
        ],
        out_specs=pl.BlockSpec((tc, tl), lambda i, j: (i, j)),
        compiler_params=pltpu.CompilerParams(
            dimension_semantics=("parallel", "parallel"),
            vmem_limit_bytes=vmem_limit),
        cost_estimate=pl.CostEstimate(
            flops=2 * C * L,
            transcendentals=0,
            bytes_accessed=2 * C * L * itemsize + 2 * C * 4),
    )(x2d, a, c)


@jax.jit
def _scale_norm_small(x, a, c):
    # Fused XLA elementwise path for lane-sparse (H*W < 128) inputs where
    # pallas_call fixed overhead would exceed the work.
    return (x.astype(jnp.float32) * a[:, None, None] + c[:, None, None]).astype(x.dtype)


def scale_norm_pallas(x, scale_list1, scale_list2, scale, switch=1):
    """x: (C, H, W) float array. `switch` must be a static Python int.
    Returns the rescaled array with the same shape/dtype as x."""
    if not isinstance(switch, int):
        raise TypeError(
            f"`switch` must be a static Python int, got {type(switch).__name__}")
    C, H, W = x.shape
    scale_list = scale_list1 if switch == 1 else scale_list2
    if C > len(scale_list):
        raise ValueError("The input channel doesn't match the range list")

    # Per-channel affine computed host-side in Python floats (no tiny XLA ops),
    # kept in float32 for precision regardless of x.dtype.
    s0, s1 = float(scale[0]), float(scale[1])
    a_host, c_host = [], []
    for b in range(C):
        lo, hi = float(scale_list[b][0]), float(scale_list[b][1])
        if hi == lo:
            raise ValueError(f"scale_list[{b}] has hi == lo ({hi}); cannot rescale")
        g = (s1 - s0) / (hi - lo)
        a_host.append(g)
        c_host.append(s0 - g * lo)
    a = jnp.asarray(a_host, dtype=jnp.float32).reshape(C, 1)
    c = jnp.asarray(c_host, dtype=jnp.float32).reshape(C, 1)

    L = H * W
    if L < 128:
        return _scale_norm_small(x, a[:, 0], c[:, 0])

    tc, tl = _choose_tiles(C, L, x.dtype)
    out2d = _scale_norm_2d(x.reshape(C, L), a, c,
                           tc=tc, tl=tl, vmem_limit=_vmem_limit_bytes())
    return out2d.reshape(C, H, W)


def scale_norm_ref(x, scale_list1, scale_list2, scale, switch=1):
    """Pure-JAX reference mirroring the PyTorch per-channel loop."""
    scale_list = scale_list1 if switch == 1 else scale_list2
    outs = []
    for b in range(x.shape[0]):
        lo, hi = scale_list[b]
        outs.append((scale[1] - scale[0]) * (x[b] - lo) / (hi - lo) + scale[0])
    return jnp.stack(outs, axis=0)


if __name__ == "__main__":
    key = jax.random.PRNGKey(0)
    C, H, W = 3, 16, 16
    # raw "image-like" input in [0, 255]
    x = jax.random.uniform(key, (C, H, W), dtype=jnp.float32,
                           minval=0.0, maxval=255.0)

    scale_list1 = [[0.0, 255.0], [0.0, 100.0], [10.0, 200.0]]
    scale_list2 = [[0.0, 255.0], [0.0, 255.0], [0.0, 255.0]]
    scale = [-1.0, 1.0]

    # Pallas path (L = 256 >= 128), both switch branches.
    y1 = jax.block_until_ready(
        scale_norm_pallas(x, scale_list1, scale_list2, scale, switch=1))
    y2 = jax.block_until_ready(
        scale_norm_pallas(x, scale_list1, scale_list2, scale, switch=0))
    y1_ref = scale_norm_ref(x, scale_list1, scale_list2, scale, switch=1)
    y2_ref = scale_norm_ref(x, scale_list1, scale_list2, scale, switch=0)
    assert jnp.allclose(y1, y1_ref, atol=1e-5, rtol=1e-5)
    assert jnp.allclose(y2, y2_ref, atol=1e-5, rtol=1e-5)

    # Tiny-spatial fallback path (L = 64 < 128).
    xs = jax.random.uniform(jax.random.PRNGKey(1), (C, 8, 8), dtype=jnp.float32,
                            minval=0.0, maxval=255.0)
    ys = jax.block_until_ready(
        scale_norm_pallas(xs, scale_list1, scale_list2, scale, switch=1))
    ys_ref = scale_norm_ref(xs, scale_list1, scale_list2, scale, switch=1)
    assert jnp.allclose(ys, ys_ref, atol=1e-5, rtol=1e-5)

    print("KERNEL_OK")
</pallas_src>

<mosaic_0001>
module attributes {stable_mosaic.version = 11 : i64} {
  func.func @_scale_norm_kernel(%arg0: i32, %arg1: i32, %arg2: memref<3x128xf32, #tpu.memory_space<vmem>>, %arg3: memref<3x1xf32, #tpu.memory_space<vmem>>, %arg4: memref<3x1xf32, #tpu.memory_space<vmem>>, %arg5: memref<3x128xf32, #tpu.memory_space<vmem>>) attributes {dimension_semantics = [#tpu.dimension_semantics<parallel>, #tpu.dimension_semantics<parallel>], iteration_bounds = array<i64: 1, 2>, scalar_prefetch = 0 : i64, scratch_operands = 0 : i64, tpu.core_type = #tpu.core_type<tc>, window_params = [{transform_indices = @transform_0, window_bounds = array<i64: 3, 128>}, {transform_indices = @transform_1, window_bounds = array<i64: 3, 1>}, {transform_indices = @transform_2, window_bounds = array<i64: 3, 1>}, {transform_indices = @transform_3, window_bounds = array<i64: 3, 128>}]} {
    %c0 = arith.constant 0 : index
    %c0_0 = arith.constant 0 : index
    %0 = vector.load %arg2[%c0, %c0_0] : memref<3x128xf32, #tpu.memory_space<vmem>>, vector<3x128xf32>
    %c0_1 = arith.constant 0 : index
    %c0_2 = arith.constant 0 : index
    %1 = vector.load %arg3[%c0_1, %c0_2] : memref<3x1xf32, #tpu.memory_space<vmem>>, vector<3x1xf32>
    %2 = vector.broadcast %1 : vector<3x1xf32> to vector<3x128xf32>
    %3 = arith.mulf %0, %2 : vector<3x128xf32>
    %c0_3 = arith.constant 0 : index
    %c0_4 = arith.constant 0 : index
    %4 = vector.load %arg4[%c0_3, %c0_4] : memref<3x1xf32, #tpu.memory_space<vmem>>, vector<3x1xf32>
    %5 = vector.broadcast %4 : vector<3x1xf32> to vector<3x128xf32>
    %6 = arith.addf %3, %5 : vector<3x128xf32>
    %c0_5 = arith.constant 0 : index
    %c0_6 = arith.constant 0 : index
    %7 = vector.load %arg5[%c0_5, %c0_6] : memref<3x128xf32, #tpu.memory_space<vmem>>, vector<3x128xf32>
    tpu.vector_store %arg5[%c0_5, %c0_6], %6 {strides = array<i32>} : memref<3x128xf32, #tpu.memory_space<vmem>>, vector<3x128xf32>,
    return
  }
  func.func @transform_0(%arg0: i32, %arg1: i32) -> (i32, i32) {
    %c0_i32 = arith.constant 0 : i32
    return %arg0, %arg1 : i32, i32
  }
  func.func @transform_1(%arg0: i32, %arg1: i32) -> (i32, i32) {
    %c0_i32 = arith.constant 0 : i32
    %c0_i32_0 = arith.constant 0 : i32
    return %arg0, %c0_i32 : i32, i32
  }
  func.func @transform_2(%arg0: i32, %arg1: i32) -> (i32, i32) {
    %c0_i32 = arith.constant 0 : i32
    %c0_i32_0 = arith.constant 0 : i32
    return %arg0, %c0_i32 : i32, i32
  }
  func.func @transform_3(%arg0: i32, %arg1: i32) -> (i32, i32) {
    %c0_i32 = arith.constant 0 : i32
    return %arg0, %arg1 : i32, i32
  }
}

</mosaic_0001>

<llo_original>
// kernel: _scale_norm_2d.1
$region0: #{_scale_norm_2d.1}
  #allocation0 [shape = 'u32[]', space=smem, size = 0x4, offset = 0x4, fixed_abs, tag = 'smem constant byte address 0x4 - core index']
  #allocation1 [shape = 'u32[144,128]{1,0:T(1,128)}', space=vmem, size = 0x12000, scoped, tag = 'internal scratch']
  %s0 = inlined_call_operand.vmem [shape: f32[3,256], index: 0, kind: input, shape index: {}]
  %s1 = inlined_call_operand.vmem [shape: f32[3,1], index: 1, kind: input, shape index: {}]
  %s2 = inlined_call_operand.vmem [shape: f32[3,1], index: 2, kind: input, shape index: {}]
  %s3 = inlined_call_operand.hbm [shape: f32[3,256], index: 3, kind: output, shape index: {}]
  %s4 = sld [smem:[#allocation0]]
  $region45: #{_scale_norm_2d.1} parent=0
    _
  %s6 = ssub.s32 1, %s4
  %s7 = scalar_select 0, %s6, %s4
  $region1: #{_scale_norm_2d.1} parent=0
    #allocation2 [shape = 'u8[4096]{0}', space=vmem, size = 0x1000, scoped, tag = 'output window, operand 0']
    #allocation3 [shape = 's32[2]{0}', space=sflag, size = 0x8, scoped, tag = 'scoped memory for _scale_norm_2d.1']
    %8 = vsyncpa [#allocation3], 0
    %s9 = scalar_lea.sflag [#allocation3], 1
    %10 = vsyncpa %s9, 0
    loop: start=0, step=1, limit=4
    $region2: #{_scale_norm_2d.1} parent=1 // loop_pre_header
      _
    $region3: #{_scale_norm_2d.1} parent=1 // loop_header
      %s12 = sphi 0, %s16
      %p13 = scmp.ge.s32.totalorder %s12, 4
      %s19 = sphi 0, %s31
      %s20 = sphi 0, %s27
      %s21 = sphi 0, %s19
      %s22 = sphi 0, %s20
      %s23 = sphi 0, %s21
      %s24 = sphi 0, %s22
      %s36 = sphi 0, %s38
      %s39 = sphi 0, %s36
      %s40 = sphi 0, %s39
      %s56 = sphi 0, %s40
      %s62 = sphi 0, %s64
      %s65 = sphi 0, %s62
      %s66 = sphi 0, %s65
      %s82 = sphi 0, %s66
      %s88 = sphi 0, %s90
      %s91 = sphi 0, %s88
      %s92 = sphi 0, %s91
      %s108 = sphi 0, %s92
      %s116 = sphi 0, %s118
      %s119 = sphi 0, %s116
      %s120 = sphi 0, %s119
      %s136 = sphi 0, %s120
    $region4: #{_scale_norm_2d.1} parent=1 // loop_header_branch
      %15 = sbr.rel (%p13) target = $region8
    $region5: #{_scale_norm_2d.1} parent=1 // loop_body
      %s17 = ssub.s32 %s12, 1
      %s18 = ssub.s32 %s12, 2
      %s25 = sadd.s32 1, %s20
      %p26 = scmp.ge.s32.totalorder %s25, 2
      %s27 = scalar_select %p26, 0, %s25
      %s28 = sadd.s32 1, %s19
      %s29 = scalar_select %p26, %s28, %s19
      %p30 = scmp.ge.s32.totalorder %s29, 1
      %s31 = scalar_select %p30, 0, %s29
      %s32 = ssub.s32 %s19, %s31
      %s33 = ssub.s32 %s20, %s27
      %s34 = sor.u32 %s32, %s33
      %p35 = scmp.eq.s32.totalorder %s34, 0
      %s37 = sadd.s32 %s36, 1
      %s38 = scalar_select %p35, %s36, %s37
      %p41 = pneg %p35
      %p42 = scmp.eq.s32.totalorder %s12, 1
      %p43 = por %p41, %p42
      %p44 = scmp.ne.s32.totalorder %s36, %s39
      %p45 = scmp.eq.s32.totalorder %s12, 0
      %p46 = por %p44, %p45
      %p47 = scmp.ne.s32.totalorder %s36, %s39
      %p48 = scmp.eq.s32.totalorder %s17, 1
      %p49 = por %p47, %p48
      %p50 = scmp.ne.s32.totalorder %s39, %s40
      %p51 = scmp.eq.s32.totalorder %s17, 0
      %p52 = por %p50, %p51
      %p53 = scmp.ne.s32.totalorder %s39, %s40
      %p54 = scmp.eq.s32.totalorder %s18, 1
      %p55 = por %p53, %p54
      %p57 = scmp.ne.s32.totalorder %s40, %s56
      %p58 = scmp.eq.s32.totalorder %s18, 0
      %p59 = por %p57, %p58
      %s60 = ssub.s32 %s19, %s31
      %p61 = scmp.eq.s32.totalorder %s60, 0
      %s63 = sadd.s32 %s62, 1
      %s64 = scalar_select %p61, %s62, %s63
      %p67 = pneg %p61
      %p68 = scmp.eq.s32.totalorder %s12, 1
      %p69 = por %p67, %p68
      %p70 = scmp.ne.s32.totalorder %s62, %s65
      %p71 = scmp.eq.s32.totalorder %s12, 0
      %p72 = por %p70, %p71
      %p73 = scmp.ne.s32.totalorder %s62, %s65
      %p74 = scmp.eq.s32.totalorder %s17, 1
      %p75 = por %p73, %p74
      %p76 = scmp.ne.s32.totalorder %s65, %s66
      %p77 = scmp.eq.s32.totalorder %s17, 0
      %p78 = por %p76, %p77
      %p79 = scmp.ne.s32.totalorder %s65, %s66
      %p80 = scmp.eq.s32.totalorder %s18, 1
      %p81 = por %p79, %p80
      %p83 = scmp.ne.s32.totalorder %s66, %s82
      %p84 = scmp.eq.s32.totalorder %s18, 0
      %p85 = por %p83, %p84
      %s86 = ssub.s32 %s19, %s31
      %p87 = scmp.eq.s32.totalorder %s86, 0
      %s89 = sadd.s32 %s88, 1
      %s90 = scalar_select %p87, %s88, %s89
      %p93 = pneg %p87
      %p94 = scmp.eq.s32.totalorder %s12, 1
      %p95 = por %p93, %p94
      %p96 = scmp.ne.s32.totalorder %s88, %s91
      %p97 = scmp.eq.s32.totalorder %s12, 0
      %p98 = por %p96, %p97
      %p99 = scmp.ne.s32.totalorder %s88, %s91
      %p100 = scmp.eq.s32.totalorder %s17, 1
      %p101 = por %p99, %p100
      %p102 = scmp.ne.s32.totalorder %s91, %s92
      %p103 = scmp.eq.s32.totalorder %s17, 0
      %p104 = por %p102, %p103
      %p105 = scmp.ne.s32.totalorder %s91, %s92
      %p106 = scmp.eq.s32.totalorder %s18, 1
      %p107 = por %p105, %p106
      %p109 = scmp.ne.s32.totalorder %s92, %s108
      %p110 = scmp.eq.s32.totalorder %s18, 0
      %p111 = por %p109, %p110
      %s112 = ssub.s32 %s19, %s31
      %s113 = ssub.s32 %s20, %s27
      %s114 = sor.u32 %s112, %s113
      %p115 = scmp.eq.s32.totalorder %s114, 0
      %s117 = sadd.s32 %s116, 1
      %s118 = scalar_select %p115, %s116, %s117
      %p121 = pneg %p115
      %p122 = scmp.eq.s32.totalorder %s12, 1
      %p123 = por %p121, %p122
      %p124 = scmp.ne.s32.totalorder %s116, %s119
      %p125 = scmp.eq.s32.totalorder %s12, 0
      %p126 = por %p124, %p125
      %p127 = scmp.ne.s32.totalorder %s116, %s119
      %p128 = scmp.eq.s32.totalorder %s17, 1
      %p129 = por %p127, %p128
      %p130 = scmp.ne.s32.totalorder %s119, %s120
      %p131 = scmp.eq.s32.totalorder %s17, 0
      %p132 = por %p130, %p131
      %p133 = scmp.ne.s32.totalorder %s119, %s120
      %p134 = scmp.eq.s32.totalorder %s18, 1
      %p135 = por %p133, %p134
      %p137 = scmp.ne.s32.totalorder %s120, %s136
      %p138 = scmp.eq.s32.totalorder %s18, 0
      %p139 = por %p137, %p138
      %p140 = scmp.le.s32.totalorder 1, %s12
      %p141 = scmp.lt.s32.totalorder %s12, 3
      %p142 = pnand %p140, %p141
      %p143 = pneg %p142
      // Predicated region
      $region9: #{_scale_norm_2d.1} parent=5 // pred_check
        _
      $region10: #{_scale_norm_2d.1} parent=5 // pred_check_branch
        %145 = sbr.rel (%p142) target = $region12
      $region11: #{_scale_norm_2d.1} parent=5 // pred_region
        %s146 = ssub.s32 %s12, 1
        // Predicated region
        $region13: #{_scale_norm_2d.1} parent=11 // pred_check
          %p147 = pneg %p78
        $region14: #{_scale_norm_2d.1} parent=11 // pred_check_branch
          %149 = sbr.rel (%p147) target = $region16
        $region15: #{_scale_norm_2d.1} parent=11 // pred_region
          %p150 = scmp.lt.s32.totalorder %s21, 0
          %s151 = scalar_select %p150, %s21, 0
          %s152 = smul.addr %s151, 4
          %s153 = scalar_lea.vmem %s1, %s152
        $region16: #{_scale_norm_2d.1} parent=11 // pred_fallthru
          _
        // Predicated region
        $region17: #{_scale_norm_2d.1} parent=11 // pred_check
          %p154 = pneg %p104
        $region18: #{_scale_norm_2d.1} parent=11 // pred_check_branch
          %156 = sbr.rel (%p154) target = $region20
        $region19: #{_scale_norm_2d.1} parent=11 // pred_region
          %p157 = scmp.lt.s32.totalorder %s21, 0
          %s158 = scalar_select %p157, %s21, 0
          %s159 = smul.addr %s158, 4
          %s160 = scalar_lea.vmem %s2, %s159
        $region20: #{_scale_norm_2d.1} parent=11 // pred_fallthru
          _
      $region12: #{_scale_norm_2d.1} parent=5 // pred_fallthru
        _
      %p161 = scmp.lt.s32.totalorder %s12, 2
      // Predicated region
      $region21: #{_scale_norm_2d.1} parent=5 // pred_check
        %p162 = pneg %p161
      $region22: #{_scale_norm_2d.1} parent=5 // pred_check_branch
        %164 = sbr.rel (%p162) target = $region24
      $region23: #{_scale_norm_2d.1} parent=5 // pred_region
        // Predicated region
        $region25: #{_scale_norm_2d.1} parent=23 // pred_check
          %p165 = pneg %p46
        $region26: #{_scale_norm_2d.1} parent=23 // pred_check_branch
          %167 = sbr.rel (%p165) target = $region28
        $region27: #{_scale_norm_2d.1} parent=23 // pred_region
          %p168 = scmp.lt.s32.totalorder %s19, 0
          %s169 = scalar_select %p168, %s19, 0
          %p170 = scmp.lt.s32.totalorder %s20, 1
          %s171 = scalar_select %p170, %s20, 1
          %s172 = smul.addr %s169, 2
          %s173 = sadd.s32 %s171, %s172
          %s174 = smul.addr %s173, 4
          %s175 = scalar_lea.vmem %s0, %s174
        $region28: #{_scale_norm_2d.1} parent=23 // pred_fallthru
          _
      $region24: #{_scale_norm_2d.1} parent=5 // pred_fallthru
        _
      %p176 = scmp.le.s32.totalorder 1, %s12
      %p177 = scmp.lt.s32.totalorder %s12, 3
      %p178 = pnand %p176, %p177
      %p179 = pneg %p178
      // Predicated region
      $region29: #{_scale_norm_2d.1} parent=5 // pred_check
        _
      $region30: #{_scale_norm_2d.1} parent=5 // pred_check_branch
        %181 = sbr.rel (%p178) target = $region32
      $region31: #{_scale_norm_2d.1} parent=5 // pred_region
        %s182 = ssub.s32 %s12, 1
        %p183 = scmp.lt.s32.totalorder %s21, 0
        %s184 = scalar_select %p183, %s21, 0
        %p185 = scmp.lt.s32.totalorder %s22, 1
        %s186 = scalar_select %p185, %s22, 1
        %s187 = smul.addr %s184, 2
        %s188 = sadd.s32 %s186, %s187
        %s189 = smul.addr %s188, 4
        %s190 = scalar_lea.vmem %s0, %s189
        %p191 = pneg %p52
        %p192 = pneg %p49
        %p193 = scmp.lt.s32.totalorder %s21, 0
        %s194 = scalar_select %p193, %s21, 0
        %s195 = smul.addr %s194, 4
        %s196 = scalar_lea.vmem %s1, %s195
        %p197 = pneg %p78
        %p198 = pneg %p75
        %p199 = scmp.lt.s32.totalorder %s21, 0
        %s200 = scalar_select %p199, %s21, 0
        %s201 = smul.addr %s200, 4
        %s202 = scalar_lea.vmem %s2, %s201
        %p203 = pneg %p104
        %p204 = pneg %p101
        %p205 = pneg %p132
        %p206 = pneg %p129
        %s207 = sand.u32 %s119, 1
        %s208 = scalar_lea.sflag [#allocation3], %s207
        %s209 = sand.u32 %s119, 1
        %s210 = smul.addr %s209, 4
        %s211 = scalar_lea.vmem [#allocation2], %s210
        %p212 = scmp.lt.s32.totalorder %s21, 0
        %s213 = scalar_select %p212, %s21, 0
        %p214 = scmp.lt.s32.totalorder %s22, 1
        %s215 = scalar_select %p214, %s22, 1
        %s216 = smul.addr %s213, 2
        %s217 = sadd.s32 %s215, %s216
        %s218 = smul.addr %s217, 4
        %s219 = scalar_lea.vmem %s0, %s218
        %p220 = scmp.lt.s32.totalorder %s21, 0
        %s221 = scalar_select %p220, %s21, 0
        %s222 = smul.addr %s221, 4
        %s223 = scalar_lea.vmem %s1, %s222
        %p224 = scmp.lt.s32.totalorder %s21, 0
        %s225 = scalar_select %p224, %s21, 0
        %s226 = smul.addr %s225, 4
        %s227 = scalar_lea.vmem %s2, %s226
        %v228 = vld [vmem:[%s219] sm:$0x7]
        %v229 = vld [vmem:[%s223] sm:$0x7]
        %231 = vset.pattern.permute.xlu0 0
        %232 = vperm.xlu0 %231, %v229
        %v233 = vpop.permute.xlu0 %232
        %v235 = vmul.f32 %v228, %v233
        %v236 = vld [vmem:[%s227] sm:$0x7]
        %238 = vset.pattern.permute.xlu0 0
        %239 = vperm.xlu0 %238, %v236
        %v240 = vpop.permute.xlu0 %239
        %v242 = vadd.f32 %v235, %v240
        %243 = vst [vmem:[%s211] sm:$0x7] %v242
        %s244 = sand.u32 %s119, 1
        %s245 = scalar_lea.sflag [#allocation3], %s244
        %s246 = sand.u32 %s119, 1
        %s247 = smul.addr %s246, 4
        %s248 = scalar_lea.vmem [#allocation2], %s247
        // Predicated region
        $region33: #{_scale_norm_2d.1} parent=31 // pred_check
          %p249 = pneg %p129
        $region34: #{_scale_norm_2d.1} parent=31 // pred_check_branch
          %251 = sbr.rel (%p249) target = $region36
        $region35: #{_scale_norm_2d.1} parent=31 // pred_region
          %s253 = ssub.s32 64, 64
          %254 = vsyncadd %s245, %s253
          %s255 = smul.addr %s21, 2
          %s256 = sadd.s32 %s22, %s255
          %s257 = smul.addr %s256, 64
          %s258 = scalar_lea.hbm %s3, %s257
          %s260 = sshll.u32 %s248, 4
          %s261 = int_to_ptr.vmem [resolvable:$true] %s260
          %263 = dma.vmem_to_hbm [thread:$0]  %s261, 64, %s258, %s245
        $region36: #{_scale_norm_2d.1} parent=31 // pred_fallthru
          _
      $region32: #{_scale_norm_2d.1} parent=5 // pred_fallthru
        _
      %p264 = scmp.le.s32.totalorder 2, %s12
      // Predicated region
      $region37: #{_scale_norm_2d.1} parent=5 // pred_check
        %p265 = pneg %p264
      $region38: #{_scale_norm_2d.1} parent=5 // pred_check_branch
        %267 = sbr.rel (%p265) target = $region40
      $region39: #{_scale_norm_2d.1} parent=5 // pred_region
        %s268 = ssub.s32 %s12, 2
        // Predicated region
        $region41: #{_scale_norm_2d.1} parent=39 // pred_check
          %p269 = pneg %p135
        $region42: #{_scale_norm_2d.1} parent=39 // pred_check_branch
          %271 = sbr.rel (%p269) target = $region44
        $region43: #{_scale_norm_2d.1} parent=39 // pred_region
          %s272 = sand.u32 %s120, 1
          %s273 = scalar_lea.sflag [#allocation3], %s272
          %s274 = sand.u32 %s120, 1
          %s275 = smul.addr %s274, 4
          %s276 = scalar_lea.vmem [#allocation2], %s275
          %277 = dma.done %s273, 64
        $region44: #{_scale_norm_2d.1} parent=39 // pred_fallthru
          _
      $region40: #{_scale_norm_2d.1} parent=5 // pred_fallthru
        _
    $region6: #{_scale_norm_2d.1} parent=1 // loop_footer
      %s16 = sadd.s32 1, %s12
    $region7: #{_scale_norm_2d.1} parent=1 // loop_footer_branch
      %11 = sbr.rel target = $region3
    $region8: #{_scale_norm_2d.1} parent=1 // loop_exit
      _
    %278 = vsyncpa [#allocation3], 1
    %s279 = scalar_lea.sflag [#allocation3], 1
    %280 = vsyncpa %s279, 1

</llo_original>
